<compile_context>
chip_gen: v5e
topology: v5e:2x2
jax: 0.10.0
libtpu: 0.0.40
codegen_flags: <defaults>
</compile_context>

<pallas_src>
import functools

import jax
import jax.numpy as jnp
from jax import lax
from jax.experimental import pallas as pl
from jax.experimental.pallas import tpu as pltpu


# 32 MiB scoped VMEM: fits comfortably under v7x's 64 MiB physical VMEM and the
# v5e/v6e defaults, with headroom for double-buffered input/output tiles.
_VMEM_LIMIT_BYTES = 32 * 1024 * 1024

# Sublane-aligned column at which the real image is placed inside the 3x3
# conv's padded VMEM scratch (keeps all scratch *stores* tile aligned; the
# +/-1 tap shifts become cheap unaligned value loads).
_COL0 = 8


def _compiler_params(dim_sem):
    return pltpu.CompilerParams(
        dimension_semantics=dim_sem, vmem_limit_bytes=_VMEM_LIMIT_BYTES
    )


def _round_up(x, m):
    return (x + m - 1) // m * m


def _pick_row_tile(m, target):
    """Largest multiple-of-8 divisor of m that is <= target (else m itself)."""
    t = min(target, m)
    t -= t % 8
    while t >= 8:
        if m % t == 0:
            return t
        t -= 8
    return m


def _pad2(a, rows, cols):
    r, c = a.shape
    return jnp.pad(a, ((0, rows - r), (0, cols - c)))


def _pad_vec(v, n):
    return jnp.pad(v, (0, n - v.shape[0]))


# ----------------------------------------------------------------------------
# Kernel 1: tiled matmul (bf16 MXU, f32 accum) + per-tile channel moments
# ----------------------------------------------------------------------------
def _matmul_stats_kernel(x_ref, w_ref, y_ref, st_ref):
    y = jnp.dot(x_ref[...], w_ref[...], preferred_element_type=jnp.float32)
    y_ref[...] = y
    # One pass over y: sum and sum-of-squares (var = E[y^2] - mean^2 later).
    st_ref[0, 0:1, :] = jnp.sum(y, axis=0, keepdims=True)
    st_ref[0, 1:2, :] = jnp.sum(y * y, axis=0, keepdims=True)


def _matmul_stats(x_bf, w_bf, *, row_tile):
    M, K = x_bf.shape
    Cout = w_bf.shape[1]
    tm = _pick_row_tile(M, row_tile)
    nt = M // tm
    return pl.pallas_call(
        _matmul_stats_kernel,
        grid=(nt,),
        in_specs=[
            pl.BlockSpec((tm, K), lambda i: (i, 0)),
            pl.BlockSpec((K, Cout), lambda i: (0, 0)),
        ],
        out_specs=(
            pl.BlockSpec((tm, Cout), lambda i: (i, 0)),
            pl.BlockSpec((1, 2, Cout), lambda i: (i, 0, 0)),
        ),
        out_shape=(
            jax.ShapeDtypeStruct((M, Cout), jnp.float32),
            jax.ShapeDtypeStruct((nt, 2, Cout), jnp.float32),
        ),
        compiler_params=_compiler_params(("parallel",)),
    )(x_bf, w_bf)


# ----------------------------------------------------------------------------
# Kernel 2: 3x3 conv (pad=1, stride) with fused BN(prev)+ReLU prologue.
# One grid step per image; no im2col in HBM — 9 accumulated in-kernel matmuls.
# ----------------------------------------------------------------------------
def _conv3x3_kernel(y1_ref, scale_ref, bias_ref, w2_ref,
                    y2_ref, stats_ref, a1p_ref,
                    *, H, W, Ho, Wo, stride):
    Cp = y1_ref.shape[-1]
    Wp = W + _COL0 + 8

    # Fused prologue: normalize + ReLU the previous conv's output (f32 math),
    # then stage it into a spatially zero-padded VMEM scratch.  The zero ring
    # implements the conv's padding=1.
    a1 = jnp.maximum(y1_ref[0] * scale_ref[...] + bias_ref[...], 0.0)
    a1p_ref[...] = jnp.zeros((H + 2, Wp, Cp), jnp.float32)
    a1p_ref[1:H + 1, _COL0:_COL0 + W, :] = a1   # lane/sublane-aligned store

    def row_body(h, carry):
        s_sum, s_sq = carry
        acc = jnp.zeros((Wo, Cp), jnp.float32)
        for kh in range(3):
            row = a1p_ref[h * stride + kh]              # (Wp, Cp) f32
            for kw in range(3):
                start = kw + _COL0 - 1
                if stride == 1:
                    seg = row[start:start + Wo]
                else:
                    # TODO(synk): stride>1 uses a strided value slice.
                    seg = lax.slice(
                        row, (start, 0),
                        (start + (Wo - 1) * stride + 1, Cp), (stride, 1))
                acc = acc + jnp.dot(
                    seg.astype(jnp.bfloat16), w2_ref[kh * 3 + kw],
                    preferred_element_type=jnp.float32)
        y2_ref[0, h] = acc
        return (s_sum + jnp.sum(acc, axis=0, keepdims=True),
                s_sq + jnp.sum(acc * acc, axis=0, keepdims=True))

    zero = jnp.zeros((1, Cp), jnp.float32)
    s_sum, s_sq = lax.fori_loop(0, Ho, row_body, (zero, zero))
    stats_ref[0, 0:1, :] = s_sum
    stats_ref[0, 1:2, :] = s_sq


def _conv3x3_bn_prologue(y1_4d, scale, bias, w2_taps, *, stride, Ho, Wo):
    N, H, W, Cp = y1_4d.shape
    kern = functools.partial(
        _conv3x3_kernel, H=H, W=W, Ho=Ho, Wo=Wo, stride=stride)
    return pl.pallas_call(
        kern,
        grid=(N,),
        in_specs=[
            pl.BlockSpec((1, H, W, Cp), lambda n: (n, 0, 0, 0)),
            pl.BlockSpec((1, Cp), lambda n: (0, 0)),
            pl.BlockSpec((1, Cp), lambda n: (0, 0)),
            pl.BlockSpec((9, Cp, Cp), lambda n: (0, 0, 0)),
        ],
        out_specs=(
            pl.BlockSpec((1, Ho, Wo, Cp), lambda n: (n, 0, 0, 0)),
            pl.BlockSpec((1, 2, Cp), lambda n: (n, 0, 0)),
        ),
        out_shape=(
            jax.ShapeDtypeStruct((N, Ho, Wo, Cp), jnp.float32),
            jax.ShapeDtypeStruct((N, 2, Cp), jnp.float32),
        ),
        scratch_shapes=[pltpu.VMEM((H + 2, W + _COL0 + 8, Cp), jnp.float32)],
        compiler_params=_compiler_params(("parallel",)),
    )(y1_4d, scale, bias, w2_taps)


# ----------------------------------------------------------------------------
# Kernel 3: conv3 (1x1) [+ fused shortcut 1x1] with BN2+ReLU prologue.
# ----------------------------------------------------------------------------
def _conv3_shortcut_kernel(y2_ref, s2_ref, b2_ref, w3_ref, xs_ref, wsc_ref,
                           y3_ref, sc_ref, st3_ref, stsc_ref):
    a2 = jnp.maximum(y2_ref[...] * s2_ref[...] + b2_ref[...], 0.0)
    a2 = a2.astype(jnp.bfloat16)
    y3 = jnp.dot(a2, w3_ref[...], preferred_element_type=jnp.float32)
    sc = jnp.dot(xs_ref[...], wsc_ref[...], preferred_element_type=jnp.float32)
    y3_ref[...] = y3
    sc_ref[...] = sc
    st3_ref[0, 0:1, :] = jnp.sum(y3, axis=0, keepdims=True)
    st3_ref[0, 1:2, :] = jnp.sum(y3 * y3, axis=0, keepdims=True)
    stsc_ref[0, 0:1, :] = jnp.sum(sc, axis=0, keepdims=True)
    stsc_ref[0, 1:2, :] = jnp.sum(sc * sc, axis=0, keepdims=True)


def _conv3_and_shortcut(y2, scale2, bias2, w3_bf, xs_bf, wsc_bf, *, row_tile):
    M, C1p = y2.shape
    C3p = w3_bf.shape[1]
    Cinp = xs_bf.shape[1]
    tm = _pick_row_tile(M, row_tile)
    nt = M // tm
    return pl.pallas_call(
        _conv3_shortcut_kernel,
        grid=(nt,),
        in_specs=[
            pl.BlockSpec((tm, C1p), lambda i: (i, 0)),
            pl.BlockSpec((1, C1p), lambda i: (0, 0)),
            pl.BlockSpec((1, C1p), lambda i: (0, 0)),
            pl.BlockSpec((C1p, C3p), lambda i: (0, 0)),
            pl.BlockSpec((tm, Cinp), lambda i: (i, 0)),
            pl.BlockSpec((Cinp, C3p), lambda i: (0, 0)),
        ],
        out_specs=(
            pl.BlockSpec((tm, C3p), lambda i: (i, 0)),
            pl.BlockSpec((tm, C3p), lambda i: (i, 0)),
            pl.BlockSpec((1, 2, C3p), lambda i: (i, 0, 0)),
            pl.BlockSpec((1, 2, C3p), lambda i: (i, 0, 0)),
        ),
        out_shape=(
            jax.ShapeDtypeStruct((M, C3p), jnp.float32),
            jax.ShapeDtypeStruct((M, C3p), jnp.float32),
            jax.ShapeDtypeStruct((nt, 2, C3p), jnp.float32),
            jax.ShapeDtypeStruct((nt, 2, C3p), jnp.float32),
        ),
        compiler_params=_compiler_params(("parallel",)),
    )(y2, scale2, bias2, w3_bf, xs_bf, wsc_bf)


def _conv3_only_kernel(y2_ref, s2_ref, b2_ref, w3_ref, y3_ref, st3_ref):
    a2 = jnp.maximum(y2_ref[...] * s2_ref[...] + b2_ref[...], 0.0)
    a2 = a2.astype(jnp.bfloat16)
    y3 = jnp.dot(a2, w3_ref[...], preferred_element_type=jnp.float32)
    y3_ref[...] = y3
    st3_ref[0, 0:1, :] = jnp.sum(y3, axis=0, keepdims=True)
    st3_ref[0, 1:2, :] = jnp.sum(y3 * y3, axis=0, keepdims=True)


def _conv3_only(y2, scale2, bias2, w3_bf, *, row_tile):
    M, C1p = y2.shape
    C3p = w3_bf.shape[1]
    tm = _pick_row_tile(M, row_tile)
    nt = M // tm
    return pl.pallas_call(
        _conv3_only_kernel,
        grid=(nt,),
        in_specs=[
            pl.BlockSpec((tm, C1p), lambda i: (i, 0)),
            pl.BlockSpec((1, C1p), lambda i: (0, 0)),
            pl.BlockSpec((1, C1p), lambda i: (0, 0)),
            pl.BlockSpec((C1p, C3p), lambda i: (0, 0)),
        ],
        out_specs=(
            pl.BlockSpec((tm, C3p), lambda i: (i, 0)),
            pl.BlockSpec((1, 2, C3p), lambda i: (i, 0, 0)),
        ),
        out_shape=(
            jax.ShapeDtypeStruct((M, C3p), jnp.float32),
            jax.ShapeDtypeStruct((nt, 2, C3p), jnp.float32),
        ),
        compiler_params=_compiler_params(("parallel",)),
    )(y2, scale2, bias2, w3_bf)


# ----------------------------------------------------------------------------
# Kernel 4: finalize — bn3(y3) + bn_sc(residual) + add + ReLU (tiled, VPU only)
# ----------------------------------------------------------------------------
def _bn_add_relu_kernel(y3_ref, s3_ref, b3_ref, r_ref, sr_ref, br_ref, o_ref):
    out = (y3_ref[...] * s3_ref[...] + b3_ref[...]
           + r_ref[...] * sr_ref[...] + br_ref[...])
    o_ref[...] = jnp.maximum(out, 0.0)


def _bn_add_relu(y3, scale3, bias3, resid, scale_r, bias_r, *, row_tile):
    M, C3p = y3.shape
    tm = _pick_row_tile(M, row_tile)
    nt = M // tm
    return pl.pallas_call(
        _bn_add_relu_kernel,
        grid=(nt,),
        in_specs=[
            pl.BlockSpec((tm, C3p), lambda i: (i, 0)),
            pl.BlockSpec((1, C3p), lambda i: (0, 0)),
            pl.BlockSpec((1, C3p), lambda i: (0, 0)),
            pl.BlockSpec((tm, C3p), lambda i: (i, 0)),
            pl.BlockSpec((1, C3p), lambda i: (0, 0)),
            pl.BlockSpec((1, C3p), lambda i: (0, 0)),
        ],
        out_specs=pl.BlockSpec((tm, C3p), lambda i: (i, 0)),
        out_shape=jax.ShapeDtypeStruct((M, C3p), jnp.float32),
        compiler_params=_compiler_params(("parallel",)),
    )(y3, scale3, bias3, resid, scale_r, bias_r)


# ----------------------------------------------------------------------------
# Wrapper-side BN folding (tiny per-channel math on partial moments)
# ----------------------------------------------------------------------------
def _bn_scale_bias(stats_tiles, gamma, beta, m_rows, eps):
    s = jnp.sum(stats_tiles, axis=0)                    # [2, C]
    mean = s[0] / m_rows
    var = jnp.maximum(s[1] / m_rows - mean * mean, 0.0)  # guard fp cancellation
    inv = lax.rsqrt(var + eps)
    scale = gamma * inv
    bias = beta - mean * scale
    return scale.reshape(1, -1), bias.reshape(1, -1)


# ----------------------------------------------------------------------------
# Bottleneck module
# ----------------------------------------------------------------------------
class BottleneckPallas:
    expansion = 4

    def __init__(self, in_planes, planes, stride=1, key=None, row_tile=256):
        if key is None:
            key = jax.random.PRNGKey(42)
        self.in_planes = in_planes
        self.planes = planes
        self.stride = stride
        # 256-row tiles keep a multi-step grid even at toy sizes; raise toward
        # 512-1024 on v5e/v6e (128 MiB VMEM), keep moderate on v7x (64 MiB).
        self.row_tile = row_tile
        self.out_planes = self.expansion * planes
        self.eps = 1e-5

        # Lane-dense (multiple-of-128) padded channel dims.
        self.cin_p = _round_up(in_planes, 128)
        self.c1_p = _round_up(planes, 128)
        self.c3_p = _round_up(self.out_planes, 128)

        k1, k2, k3, k4 = jax.random.split(key, 4)

        # Raw (logical, f32) weights — used only by the pure-JAX reference.
        self.w1_raw = 0.1 * jax.random.normal(k1, (in_planes, planes), jnp.float32)
        w2_torch = 0.1 * jax.random.normal(k2, (planes, planes, 3, 3), jnp.float32)
        self.w2_raw = jnp.transpose(w2_torch, (2, 3, 1, 0))   # (kh, kw, cin, cout)
        self.w3_raw = 0.1 * jax.random.normal(k3, (planes, self.out_planes),
                                              jnp.float32)

        # Padded bf16 weights used by the Pallas kernels (zero padding rows /
        # cols contribute exactly zero to the matmuls).
        self.w1 = _pad2(self.w1_raw, self.cin_p, self.c1_p).astype(jnp.bfloat16)
        w2_taps = self.w2_raw.reshape(9, planes, planes)
        self.w2 = jnp.stack(
            [_pad2(w2_taps[t], self.c1_p, self.c1_p) for t in range(9)]
        ).astype(jnp.bfloat16)
        self.w3 = _pad2(self.w3_raw, self.c1_p, self.c3_p).astype(jnp.bfloat16)

        # BatchNorm affine params (fresh PyTorch module: gamma=1, beta=0).
        # Padded channels get gamma=0 so they stay exactly zero everywhere.
        self.g1 = _pad_vec(jnp.ones((planes,), jnp.float32), self.c1_p)
        self.b1 = jnp.zeros((self.c1_p,), jnp.float32)
        self.g2 = _pad_vec(jnp.ones((planes,), jnp.float32), self.c1_p)
        self.b2 = jnp.zeros((self.c1_p,), jnp.float32)
        self.g3 = _pad_vec(jnp.ones((self.out_planes,), jnp.float32), self.c3_p)
        self.b3 = jnp.zeros((self.c3_p,), jnp.float32)

        self.has_shortcut = (stride != 1) or (in_planes != self.out_planes)
        if self.has_shortcut:
            self.wsc_raw = 0.1 * jax.random.normal(
                k4, (in_planes, self.out_planes), jnp.float32)
            self.wsc = _pad2(self.wsc_raw, self.cin_p, self.c3_p).astype(jnp.bfloat16)
            self.gsc = _pad_vec(jnp.ones((self.out_planes,), jnp.float32), self.c3_p)
            self.bsc = jnp.zeros((self.c3_p,), jnp.float32)

    def __call__(self, x_nchw):
        N, C, H, W = x_nchw.shape
        assert C == self.in_planes
        s = self.stride
        Ho = (H + 2 - 3) // s + 1
        Wo = (W + 2 - 3) // s + 1
        M0 = N * H * W
        M1 = N * Ho * Wo
        eps = self.eps

        x_nhwc = jnp.transpose(x_nchw, (0, 2, 3, 1)).astype(jnp.float32)
        x2d = x_nhwc.reshape(M0, C)
        x2d_bf = jnp.pad(x2d, ((0, 0), (0, self.cin_p - C))).astype(jnp.bfloat16)

        # conv1 (1x1): tiled bf16 matmul + global-BN partial moments.
        y1, st1 = _matmul_stats(x2d_bf, self.w1, row_tile=self.row_tile)
        scale1, bias1 = _bn_scale_bias(st1, self.g1, self.b1, M0, eps)

        # conv2 (3x3, pad=1, stride): BN1+ReLU fused into the prologue,
        # 9 accumulated in-kernel matmuls — no im2col slab in HBM.
        y2_4d, st2 = _conv3x3_bn_prologue(
            y1.reshape(N, H, W, self.c1_p), scale1, bias1, self.w2,
            stride=s, Ho=Ho, Wo=Wo)
        scale2, bias2 = _bn_scale_bias(st2, self.g2, self.b2, M1, eps)
        y2 = y2_4d.reshape(M1, self.c1_p)

        # conv3 (1x1) [+ fused shortcut 1x1], BN2+ReLU fused into the prologue.
        if self.has_shortcut:
            # TODO(synk): the strided shortcut subsample could move into the
            # kernel via a strided index_map; done with wrapper glue for now.
            xs = x_nhwc[:, ::s, ::s, :].reshape(M1, C)
            xs_bf = jnp.pad(xs, ((0, 0), (0, self.cin_p - C))).astype(jnp.bfloat16)
            y3, sc, st3, stsc = _conv3_and_shortcut(
                y2, scale2, bias2, self.w3, xs_bf, self.wsc,
                row_tile=self.row_tile)
            scale_r, bias_r = _bn_scale_bias(stsc, self.gsc, self.bsc, M1, eps)
            resid = sc
        else:
            y3, st3 = _conv3_only(y2, scale2, bias2, self.w3,
                                  row_tile=self.row_tile)
            resid = jnp.pad(x2d, ((0, 0), (0, self.c3_p - C)))   # identity (f32)
            scale_r = jnp.ones((1, self.c3_p), jnp.float32)
            bias_r = jnp.zeros((1, self.c3_p), jnp.float32)
        scale3, bias3 = _bn_scale_bias(st3, self.g3, self.b3, M1, eps)

        # finalize: bn3 + bn_shortcut + add + ReLU (tiled element-wise pass).
        out2d = _bn_add_relu(y3, scale3, bias3, resid, scale_r, bias_r,
                             row_tile=self.row_tile)
        out = out2d.reshape(N, Ho, Wo, self.c3_p)[..., :self.out_planes]
        return jnp.transpose(out, (0, 3, 1, 2))   # back to NCHW


# ----------------------------------------------------------------------------
# Pure-JAX reference (mirrors the kernels' bf16 MXU-input precision)
# ----------------------------------------------------------------------------
def _im2col_3x3(x_nhwc, stride):
    N, H, W, C = x_nhwc.shape
    xp = jnp.pad(x_nhwc, ((0, 0), (1, 1), (1, 1), (0, 0)))
    Ho = (H + 2 - 3) // stride + 1
    Wo = (W + 2 - 3) // stride + 1
    cols = [xp[:, kh:kh + Ho * stride:stride, kw:kw + Wo * stride:stride, :]
            for kh in range(3) for kw in range(3)]
    return jnp.concatenate(cols, axis=-1).reshape(N * Ho * Wo, 9 * C), Ho, Wo


def _reference(block, x_nchw):
    eps = block.eps
    N, C, H, W = x_nchw.shape
    s = block.stride
    P, OP = block.planes, block.out_planes

    def mm(a, b):  # bf16 MXU inputs / f32 accumulation, like the kernels
        return jnp.dot(a.astype(jnp.bfloat16), b.astype(jnp.bfloat16),
                       preferred_element_type=jnp.float32)

    def bn(y, gamma, beta):
        mean = jnp.mean(y, axis=0, keepdims=True)
        var = jnp.mean((y - mean) ** 2, axis=0, keepdims=True)
        return (y - mean) * lax.rsqrt(var + eps) * gamma[None, :] + beta[None, :]

    relu = lambda t: jnp.maximum(t, 0.0)
    ones = lambda n: jnp.ones((n,), jnp.float32)
    zeros = lambda n: jnp.zeros((n,), jnp.float32)

    x_nhwc = jnp.transpose(x_nchw, (0, 2, 3, 1)).astype(jnp.float32)
    x2d = x_nhwc.reshape(N * H * W, C)

    a1 = relu(bn(mm(x2d, block.w1_raw), ones(P), zeros(P)))
    patches, Ho, Wo = _im2col_3x3(a1.reshape(N, H, W, P), s)
    a2 = relu(bn(mm(patches, block.w2_raw.reshape(9 * P, P)), ones(P), zeros(P)))
    o3 = bn(mm(a2, block.w3_raw), ones(OP), zeros(OP))
    if block.has_shortcut:
        xs = x_nhwc[:, ::s, ::s, :].reshape(N * Ho * Wo, C)
        sc = bn(mm(xs, block.wsc_raw), ones(OP), zeros(OP))
    else:
        sc = x2d
    out = relu(o3 + sc)
    return jnp.transpose(out.reshape(N, Ho, Wo, OP), (0, 3, 1, 2))


if __name__ == "__main__":
    key = jax.random.PRNGKey(0)
    x = jax.random.normal(key, (2, 4, 16, 16), jnp.float32)   # NCHW, like PyTorch

    block = BottleneckPallas(in_planes=4, planes=4, stride=1,
                             key=jax.random.PRNGKey(42))

    out = jax.block_until_ready(block(x))
    assert out.shape == (2, 16, 16, 16), out.shape   # (N, 4*planes, H, W)

    ref = jax.block_until_ready(_reference(block, x))
    max_err = float(jnp.max(jnp.abs(out - ref)))
    assert jnp.allclose(out, ref, rtol=2e-3, atol=2e-3), (
        f"mismatch vs reference (max abs err {max_err})")

    print("KERNEL_OK")
</pallas_src>

<mosaic_0001>
module attributes {stable_mosaic.version = 11 : i64} {
  func.func @_matmul_stats_kernel(%arg0: i32, %arg1: memref<256x128xbf16, #tpu.memory_space<vmem>>, %arg2: memref<128x128xbf16, #tpu.memory_space<vmem>>, %arg3: memref<256x128xf32, #tpu.memory_space<vmem>>, %arg4: memref<1x2x128xf32, #tpu.memory_space<vmem>>) attributes {dimension_semantics = [#tpu.dimension_semantics<parallel>], iteration_bounds = array<i64: 2>, scalar_prefetch = 0 : i64, scratch_operands = 0 : i64, tpu.core_type = #tpu.core_type<tc>, window_params = [{transform_indices = @transform_0, window_bounds = array<i64: 256, 128>}, {pipeline_mode = #tpu.pipeline_mode<synchronous>, transform_indices = @transform_1, window_bounds = array<i64: 128, 128>}, {transform_indices = @transform_2, window_bounds = array<i64: 256, 128>}, {transform_indices = @transform_3, window_bounds = array<i64: 1, 2, 128>}]} {
    %c0 = arith.constant 0 : index
    %c0_0 = arith.constant 0 : index
    %0 = vector.load %arg1[%c0, %c0_0] : memref<256x128xbf16, #tpu.memory_space<vmem>>, vector<256x128xbf16>
    %c0_1 = arith.constant 0 : index
    %c0_2 = arith.constant 0 : index
    %1 = vector.load %arg2[%c0_1, %c0_2] : memref<128x128xbf16, #tpu.memory_space<vmem>>, vector<128x128xbf16>
    %cst = arith.constant dense<0.000000e+00> : vector<256x128xf32>
    %2 = tpu.matmul %0, %1, %cst {dimension_numbers = #tpu.dot_dimension_numbers<[1], [0], [0], [1], [0, 0, 1, 1], [], []>} : vector<256x128xbf16>, vector<128x128xbf16>, vector<256x128xf32> -> vector<256x128xf32>
    %c0_3 = arith.constant 0 : index
    %c0_4 = arith.constant 0 : index
    %3 = vector.load %arg3[%c0_3, %c0_4] : memref<256x128xf32, #tpu.memory_space<vmem>>, vector<256x128xf32>
    tpu.vector_store %arg3[%c0_3, %c0_4], %2 {strides = array<i32>} : memref<256x128xf32, #tpu.memory_space<vmem>>, vector<256x128xf32>,
    %cst_5 = arith.constant dense<0.000000e+00> : vector<128xf32>
    %4 = vector.multi_reduction <add>, %2, %cst_5 [0] : vector<256x128xf32> to vector<128xf32>
    %5 = vector.shape_cast %4 : vector<128xf32> to vector<1x128xf32>
    %c0_6 = arith.constant 0 : index
    %c0_7 = arith.constant 0 : index
    %c0_8 = arith.constant 0 : index
    %6 = vector.load %arg4[%c0_6, %c0_7, %c0_8] : memref<1x2x128xf32, #tpu.memory_space<vmem>>, vector<1x1x128xf32>
    %7 = vector.shape_cast %6 : vector<1x1x128xf32> to vector<1x128xf32>
    %8 = vector.shape_cast %5 : vector<1x128xf32> to vector<1x1x128xf32>
    tpu.vector_store %arg4[%c0_6, %c0_7, %c0_8], %8 {strides = array<i32>} : memref<1x2x128xf32, #tpu.memory_space<vmem>>, vector<1x1x128xf32>,
    %9 = arith.mulf %2, %2 : vector<256x128xf32>
    %cst_9 = arith.constant dense<0.000000e+00> : vector<128xf32>
    %10 = vector.multi_reduction <add>, %9, %cst_9 [0] : vector<256x128xf32> to vector<128xf32>
    %11 = vector.shape_cast %10 : vector<128xf32> to vector<1x128xf32>
    %c0_10 = arith.constant 0 : index
    %c1 = arith.constant 1 : index
    %c0_11 = arith.constant 0 : index
    %12 = vector.load %arg4[%c0_10, %c1, %c0_11] : memref<1x2x128xf32, #tpu.memory_space<vmem>>, vector<1x1x128xf32>
    %13 = vector.shape_cast %12 : vector<1x1x128xf32> to vector<1x128xf32>
    %14 = vector.shape_cast %11 : vector<1x128xf32> to vector<1x1x128xf32>
    tpu.vector_store %arg4[%c0_10, %c1, %c0_11], %14 {strides = array<i32>} : memref<1x2x128xf32, #tpu.memory_space<vmem>>, vector<1x1x128xf32>,
    return
  }
  func.func @transform_0(%arg0: i32) -> (i32, i32) {
    %c0_i32 = arith.constant 0 : i32
    %c0_i32_0 = arith.constant 0 : i32
    return %arg0, %c0_i32 : i32, i32
  }
  func.func @transform_1(%arg0: i32) -> (i32, i32) {
    %c0_i32 = arith.constant 0 : i32
    %c0_i32_0 = arith.constant 0 : i32
    %c0_i32_1 = arith.constant 0 : i32
    return %c0_i32, %c0_i32_0 : i32, i32
  }
  func.func @transform_2(%arg0: i32) -> (i32, i32) {
    %c0_i32 = arith.constant 0 : i32
    %c0_i32_0 = arith.constant 0 : i32
    return %arg0, %c0_i32 : i32, i32
  }
  func.func @transform_3(%arg0: i32) -> (i32, i32, i32) {
    %c0_i32 = arith.constant 0 : i32
    %c0_i32_0 = arith.constant 0 : i32
    %c0_i32_1 = arith.constant 0 : i32
    return %arg0, %c0_i32, %c0_i32_0 : i32, i32, i32
  }
}

</mosaic_0001>

<llo_original>
// kernel: tpu_custom_call.1
$region0: #{tpu_custom_call.1}
  #allocation0 [shape = 'u32[]', space=smem, size = 0x4, offset = 0x4, fixed_abs, tag = 'smem constant byte address 0x4 - core index']
  #allocation1 [shape = 'u32[72,128]{1,0:T(1,128)}', space=vmem, size = 0x9000, scoped, tag = 'internal scratch']
  %s0 = inlined_call_operand.hbm [shape: bf16[512,128], index: 0, kind: input, shape index: {}]
  %s1 = inlined_call_operand.hbm [shape: bf16[128,128], index: 1, kind: input, shape index: {}]
  %s2 = inlined_call_operand.hbm [shape: f32[512,128], index: 2, kind: output, shape index: {0}]
  %s3 = inlined_call_operand.hbm [shape: f32[2,2,128], index: 3, kind: output, shape index: {1}]
  %4 = xla_tuple %s2, %s3
  %s5 = sld [smem:[#allocation0]]
  $region57: #{tpu_custom_call.1} parent=0
    _
  %s7 = ssub.s32 1, %s5
  %s8 = scalar_select 0, %s7, %s5
  $region1: #{tpu_custom_call.1} parent=0
    #allocation2 [shape = 'u8[131072]{0}', space=vmem, size = 0x20000, scoped, tag = 'input window, operand 0']
    #allocation3 [shape = 's32[2]{0}', space=sflag, size = 0x8, scoped, tag = 'scoped memory for tpu_custom_call.1']
    #allocation4 [shape = 's32[2]{0}', space=sflag, size = 0x8, scoped, tag = 'scoped memory for tpu_custom_call.1']
    #allocation5 [shape = 'u8[32768]{0}', space=vmem, size = 0x8000, scoped, tag = 'input window, operand 1, single buffered']
    #allocation6 [shape = 's32[1]{0}', space=sflag, size = 0x4, scoped, tag = 'scoped memory for tpu_custom_call.1']
    #allocation7 [shape = 'u8[262144]{0}', space=vmem, size = 0x40000, scoped, tag = 'output window, operand 0']
    #allocation8 [shape = 'u8[2048]{0}', space=vmem, size = 0x800, scoped, tag = 'output window, operand 1']
    #allocation9 [shape = 's32[2]{0}', space=sflag, size = 0x8, scoped, tag = 'scoped memory for tpu_custom_call.1']
    %9 = vsyncpa [#allocation3], 0
    %s10 = scalar_lea.sflag [#allocation3], 1
    %11 = vsyncpa %s10, 0
    %12 = vsyncpa [#allocation6], 0
    %13 = vsyncpa [#allocation4], 0
    %s14 = scalar_lea.sflag [#allocation4], 1
    %15 = vsyncpa %s14, 0
    %16 = vsyncpa [#allocation9], 0
    %s17 = scalar_lea.sflag [#allocation9], 1
    %18 = vsyncpa %s17, 0
    loop: start=0, step=1, limit=4
    $region2: #{tpu_custom_call.1} parent=1 // loop_pre_header
      _
    $region3: #{tpu_custom_call.1} parent=1 // loop_header
      %s20 = sphi 0, %s24
      %p21 = scmp.ge.s32.totalorder %s20, 4
      %s30 = sphi 0, %s32
      %s33 = sphi 0, %s30
      %s34 = sphi 0, %s33
      %s50 = sphi 0, %s34
      %s54 = sphi 0, %s54
      %s56 = sphi 0, %s54
      %s57 = sphi 0, %s56
      %s71 = sphi 0, %s57
      %s77 = sphi 0, %s79
      %s80 = sphi 0, %s77
      %s81 = sphi 0, %s80
      %s97 = sphi 0, %s81
      %s103 = sphi 0, %s105
      %s106 = sphi 0, %s103
      %s107 = sphi 0, %s106
      %s123 = sphi 0, %s107
    $region4: #{tpu_custom_call.1} parent=1 // loop_header_branch
      %23 = sbr.rel (%p21) target = $region8
    $region5: #{tpu_custom_call.1} parent=1 // loop_body
      %s25 = ssub.s32 %s20, 1
      %s26 = ssub.s32 %s20, 2
      %s27 = sadd.s32 %s20, 1
      %s28 = ssub.s32 %s20, %s27
      %p29 = scmp.eq.s32.totalorder %s28, 0
      %s31 = sadd.s32 %s30, 1
      %s32 = scalar_select %p29, %s30, %s31
      %p35 = pneg %p29
      %p36 = scmp.eq.s32.totalorder %s20, 1
      %p37 = por %p35, %p36
      %p38 = scmp.ne.s32.totalorder %s30, %s33
      %p39 = scmp.eq.s32.totalorder %s20, 0
      %p40 = por %p38, %p39
      %p41 = scmp.ne.s32.totalorder %s30, %s33
      %p42 = scmp.eq.s32.totalorder %s25, 1
      %p43 = por %p41, %p42
      %p44 = scmp.ne.s32.totalorder %s33, %s34
      %p45 = scmp.eq.s32.totalorder %s25, 0
      %p46 = por %p44, %p45
      %p47 = scmp.ne.s32.totalorder %s33, %s34
      %p48 = scmp.eq.s32.totalorder %s26, 1
      %p49 = por %p47, %p48
      %p51 = scmp.ne.s32.totalorder %s34, %s50
      %p52 = scmp.eq.s32.totalorder %s26, 0
      %p53 = por %p51, %p52
      %s55 = sadd.s32 %s54, 1
      %p58 = scmp.eq.s32.totalorder %s20, 1
      %p59 = scmp.ne.s32.totalorder %s54, %s56
      %p60 = scmp.eq.s32.totalorder %s20, 0
      %p61 = por %p59, %p60
      %p62 = scmp.ne.s32.totalorder %s54, %s56
      %p63 = scmp.eq.s32.totalorder %s25, 1
      %p64 = por %p62, %p63
      %p65 = scmp.ne.s32.totalorder %s56, %s57
      %p66 = scmp.eq.s32.totalorder %s25, 0
      %p67 = por %p65, %p66
      %p68 = scmp.ne.s32.totalorder %s56, %s57
      %p69 = scmp.eq.s32.totalorder %s26, 1
      %p70 = por %p68, %p69
      %p72 = scmp.ne.s32.totalorder %s57, %s71
      %p73 = scmp.eq.s32.totalorder %s26, 0
      %p74 = por %p72, %p73
      %s75 = ssub.s32 %s20, %s27
      %p76 = scmp.eq.s32.totalorder %s75, 0
      %s78 = sadd.s32 %s77, 1
      %s79 = scalar_select %p76, %s77, %s78
      %p82 = pneg %p76
      %p83 = scmp.eq.s32.totalorder %s20, 1
      %p84 = por %p82, %p83
      %p85 = scmp.ne.s32.totalorder %s77, %s80
      %p86 = scmp.eq.s32.totalorder %s20, 0
      %p87 = por %p85, %p86
      %p88 = scmp.ne.s32.totalorder %s77, %s80
      %p89 = scmp.eq.s32.totalorder %s25, 1
      %p90 = por %p88, %p89
      %p91 = scmp.ne.s32.totalorder %s80, %s81
      %p92 = scmp.eq.s32.totalorder %s25, 0
      %p93 = por %p91, %p92
      %p94 = scmp.ne.s32.totalorder %s80, %s81
      %p95 = scmp.eq.s32.totalorder %s26, 1
      %p96 = por %p94, %p95
      %p98 = scmp.ne.s32.totalorder %s81, %s97
      %p99 = scmp.eq.s32.totalorder %s26, 0
      %p100 = por %p98, %p99
      %s101 = ssub.s32 %s20, %s27
      %p102 = scmp.eq.s32.totalorder %s101, 0
      %s104 = sadd.s32 %s103, 1
      %s105 = scalar_select %p102, %s103, %s104
      %p108 = pneg %p102
      %p109 = scmp.eq.s32.totalorder %s20, 1
      %p110 = por %p108, %p109
      %p111 = scmp.ne.s32.totalorder %s103, %s106
      %p112 = scmp.eq.s32.totalorder %s20, 0
      %p113 = por %p111, %p112
      %p114 = scmp.ne.s32.totalorder %s103, %s106
      %p115 = scmp.eq.s32.totalorder %s25, 1
      %p116 = por %p114, %p115
      %p117 = scmp.ne.s32.totalorder %s106, %s107
      %p118 = scmp.eq.s32.totalorder %s25, 0
      %p119 = por %p117, %p118
      %p120 = scmp.ne.s32.totalorder %s106, %s107
      %p121 = scmp.eq.s32.totalorder %s26, 1
      %p122 = por %p120, %p121
      %p124 = scmp.ne.s32.totalorder %s107, %s123
      %p125 = scmp.eq.s32.totalorder %s26, 0
      %p126 = por %p124, %p125
      %p127 = scmp.le.s32.totalorder 1, %s20
      %p128 = scmp.lt.s32.totalorder %s20, 3
      %p129 = pnand %p127, %p128
      %p130 = pneg %p129
      // Predicated region
      $region9: #{tpu_custom_call.1} parent=5 // pred_check
        _
      $region10: #{tpu_custom_call.1} parent=5 // pred_check_branch
        %132 = sbr.rel (%p129) target = $region12
      $region11: #{tpu_custom_call.1} parent=5 // pred_region
        %s133 = ssub.s32 %s20, 1
        // Predicated region
        $region13: #{tpu_custom_call.1} parent=11 // pred_check
          %p134 = pneg %p67
        $region14: #{tpu_custom_call.1} parent=11 // pred_check_branch
          %136 = sbr.rel (%p134) target = $region16
        $region15: #{tpu_custom_call.1} parent=11 // pred_region
          %138 = vsyncadd [#allocation6], 0
          %s139 = sshll.u32 %s1, 4
          %s140 = int_to_ptr.hbm [resolvable:$true] %s139
          %s141 = sshll.u32 [#allocation5], 4
          %s142 = int_to_ptr.vmem [resolvable:$true] %s141
          %147 = dma.hbm_to_vmem [thread:$0]  %s140, 1024, %s142, [#allocation6], 64, 64, 4
        $region16: #{tpu_custom_call.1} parent=11 // pred_fallthru
          _
      $region12: #{tpu_custom_call.1} parent=5 // pred_fallthru
        _
      %p148 = scmp.lt.s32.totalorder %s20, 2
      // Predicated region
      $region17: #{tpu_custom_call.1} parent=5 // pred_check
        %p149 = pneg %p148
      $region18: #{tpu_custom_call.1} parent=5 // pred_check_branch
        %151 = sbr.rel (%p149) target = $region20
      $region19: #{tpu_custom_call.1} parent=5 // pred_region
        // Predicated region
        $region21: #{tpu_custom_call.1} parent=19 // pred_check
          %p152 = pneg %p40
        $region22: #{tpu_custom_call.1} parent=19 // pred_check_branch
          %154 = sbr.rel (%p152) target = $region24
        $region23: #{tpu_custom_call.1} parent=19 // pred_region
          %s155 = sand.u32 %s30, 1
          %s156 = scalar_lea.sflag [#allocation3], %s155
          %s157 = sand.u32 %s30, 1
          %s158 = smul.addr %s157, 128
          %s159 = scalar_lea.vmem [#allocation2], %s158
          %s160 = smul.u32 32, %s20
          %162 = vsyncadd %s156, 0
          %s163 = smul.addr %s160, 4
          %s164 = scalar_lea.hbm %s0, %s163
          %s165 = sshll.u32 %s164, 4
          %s166 = int_to_ptr.hbm [resolvable:$true] %s165
          %s167 = sshll.u32 %s159, 4
          %s168 = int_to_ptr.vmem [resolvable:$true] %s167
          %173 = dma.hbm_to_vmem [thread:$0]  %s166, 2048, %s168, %s156, 64, 64, 4
        $region24: #{tpu_custom_call.1} parent=19 // pred_fallthru
          _
      $region20: #{tpu_custom_call.1} parent=5 // pred_fallthru
        _
      %p174 = scmp.le.s32.totalorder 1, %s20
      %p175 = scmp.lt.s32.totalorder %s20, 3
      %p176 = pnand %p174, %p175
      %p177 = pneg %p176
      // Predicated region
      $region25: #{tpu_custom_call.1} parent=5 // pred_check
        _
      $region26: #{tpu_custom_call.1} parent=5 // pred_check_branch
        %179 = sbr.rel (%p176) target = $region28
      $region27: #{tpu_custom_call.1} parent=5 // pred_region
        %s180 = ssub.s32 %s20, 1
        %s181 = sand.u32 %s33, 1
        %s182 = scalar_lea.sflag [#allocation3], %s181
        %s183 = sand.u32 %s33, 1
        %s184 = smul.addr %s183, 128
        %s185 = scalar_lea.vmem [#allocation2], %s184
        // Predicated region
        $region29: #{tpu_custom_call.1} parent=27 // pred_check
          %p186 = pneg %p46
        $region30: #{tpu_custom_call.1} parent=27 // pred_check_branch
          %188 = sbr.rel (%p186) target = $region32
        $region31: #{tpu_custom_call.1} parent=27 // pred_region
          %190 = dma.done %s182, 2048
        $region32: #{tpu_custom_call.1} parent=27 // pred_fallthru
          _
        // Predicated region
        $region33: #{tpu_custom_call.1} parent=27 // pred_check
          %p191 = pneg %p67
        $region34: #{tpu_custom_call.1} parent=27 // pred_check_branch
          %193 = sbr.rel (%p191) target = $region36
        $region35: #{tpu_custom_call.1} parent=27 // pred_region
          %195 = dma.done [#allocation6], 1024
        $region36: #{tpu_custom_call.1} parent=27 // pred_fallthru
          _
        %s196 = sand.u32 %s33, 1
        %s197 = scalar_lea.sflag [#allocation3], %s196
        %s198 = sand.u32 %s33, 1
        %s199 = smul.addr %s198, 128
        %s200 = scalar_lea.vmem [#allocation2], %s199
        %p201 = pneg %p46
        %p202 = pneg %p43
        %p203 = pneg %p67
        %p204 = pneg %p64
        %p205 = pneg %p93
        %p206 = pneg %p90
        %s207 = sand.u32 %s80, 1
        %s208 = scalar_lea.sflag [#allocation4], %s207
        %s209 = sand.u32 %s80, 1
        %s210 = smul.addr %s209, 256
        %s211 = scalar_lea.vmem [#allocation7], %s210
        %p212 = pneg %p119
        %p213 = pneg %p116
        %s214 = sand.u32 %s106, 1
        %s215 = scalar_lea.sflag [#allocation9], %s214
        %s216 = sand.u32 %s106, 1
        %s217 = smul.addr %s216, 2
        %s218 = scalar_lea.vmem [#allocation8], %s217
        %s219 = smul.u32 32, %s25
        %s220 = smul.u32 32, %s25
        %v221 = vld [vmem:[%s185] sm:$0xf]
        %v222 = vld [vmem:[%s185 + $0x4] sm:$0xf]
        %v223 = vld [vmem:[%s185 + $0x8] sm:$0xf]
        %v224 = vld [vmem:[%s185 + $0xc] sm:$0xf]
        %v225 = vld [vmem:[%s185 + $0x10] sm:$0xf]
        %v226 = vld [vmem:[%s185 + $0x14] sm:$0xf]
        %v227 = vld [vmem:[%s185 + $0x18] sm:$0xf]
        %v228 = vld [vmem:[%s185 + $0x1c] sm:$0xf]
        %v229 = vld [vmem:[%s185 + $0x20] sm:$0xf]
        %v230 = vld [vmem:[%s185 + $0x24] sm:$0xf]
        %v231 = vld [vmem:[%s185 + $0x28] sm:$0xf]
        %v232 = vld [vmem:[%s185 + $0x2c] sm:$0xf]
        %v233 = vld [vmem:[%s185 + $0x30] sm:$0xf]
        %v234 = vld [vmem:[%s185 + $0x34] sm:$0xf]
        %v235 = vld [vmem:[%s185 + $0x38] sm:$0xf]
        %v236 = vld [vmem:[%s185 + $0x3c] sm:$0xf]
        %v237 = vld [vmem:[%s185 + $0x40] sm:$0xf]
        %v238 = vld [vmem:[%s185 + $0x44] sm:$0xf]
        %v239 = vld [vmem:[%s185 + $0x48] sm:$0xf]
        %v240 = vld [vmem:[%s185 + $0x4c] sm:$0xf]
        %v241 = vld [vmem:[%s185 + $0x50] sm:$0xf]
        %v242 = vld [vmem:[%s185 + $0x54] sm:$0xf]
        %v243 = vld [vmem:[%s185 + $0x58] sm:$0xf]
        %v244 = vld [vmem:[%s185 + $0x5c] sm:$0xf]
        %v245 = vld [vmem:[%s185 + $0x60] sm:$0xf]
        %v246 = vld [vmem:[%s185 + $0x64] sm:$0xf]
        %v247 = vld [vmem:[%s185 + $0x68] sm:$0xf]
        %v248 = vld [vmem:[%s185 + $0x6c] sm:$0xf]
        %v249 = vld [vmem:[%s185 + $0x70] sm:$0xf]
        %v250 = vld [vmem:[%s185 + $0x74] sm:$0xf]
        %v251 = vld [vmem:[%s185 + $0x78] sm:$0xf]
        %v252 = vld [vmem:[%s185 + $0x7c] sm:$0xf]
        %v253 = vld [vmem:[#allocation5] sm:$0xf]
        %v254 = vld [vmem:[#allocation5 + $0x4] sm:$0xf]
        %v255 = vld [vmem:[#allocation5 + $0x8] sm:$0xf]
        %v256 = vld [vmem:[#allocation5 + $0xc] sm:$0xf]
        %v257 = vld [vmem:[#allocation5 + $0x10] sm:$0xf]
        %v258 = vld [vmem:[#allocation5 + $0x14] sm:$0xf]
        %v259 = vld [vmem:[#allocation5 + $0x18] sm:$0xf]
        %v260 = vld [vmem:[#allocation5 + $0x1c] sm:$0xf]
        %v261 = vld [vmem:[#allocation5 + $0x20] sm:$0xf]
        %v262 = vld [vmem:[#allocation5 + $0x24] sm:$0xf]
        %v263 = vld [vmem:[#allocation5 + $0x28] sm:$0xf]
        %v264 = vld [vmem:[#allocation5 + $0x2c] sm:$0xf]
        %v265 = vld [vmem:[#allocation5 + $0x30] sm:$0xf]
        %v266 = vld [vmem:[#allocation5 + $0x34] sm:$0xf]
        %v267 = vld [vmem:[#allocation5 + $0x38] sm:$0xf]
        %v268 = vld [vmem:[#allocation5 + $0x3c] sm:$0xf]
        %v301 = vunpack.c.l.b16 %v221
        %v302 = vunpack.c.l.b16 %v222
        %v303 = vunpack.c.l.b16 %v223
        %v304 = vunpack.c.l.b16 %v224
        %v305 = vunpack.c.l.b16 %v225
        %v306 = vunpack.c.l.b16 %v226
        %v307 = vunpack.c.l.b16 %v227
        %v308 = vunpack.c.l.b16 %v228
        %v309 = vunpack.c.l.b16 %v229
        %v310 = vunpack.c.l.b16 %v230
        %v311 = vunpack.c.l.b16 %v231
        %v312 = vunpack.c.l.b16 %v232
        %v313 = vunpack.c.l.b16 %v233
        %v314 = vunpack.c.l.b16 %v234
        %v315 = vunpack.c.l.b16 %v235
        %v316 = vunpack.c.l.b16 %v236
        %v317 = vunpack.c.l.b16 %v237
        %v318 = vunpack.c.l.b16 %v238
        %v319 = vunpack.c.l.b16 %v239
        %v320 = vunpack.c.l.b16 %v240
        %v321 = vunpack.c.l.b16 %v241
        %v322 = vunpack.c.l.b16 %v242
        %v323 = vunpack.c.l.b16 %v243
        %v324 = vunpack.c.l.b16 %v244
        %v325 = vunpack.c.l.b16 %v245
        %v326 = vunpack.c.l.b16 %v246
        %v327 = vunpack.c.l.b16 %v247
        %v328 = vunpack.c.l.b16 %v248
        %v329 = vunpack.c.l.b16 %v249
        %v330 = vunpack.c.l.b16 %v250
        %v331 = vunpack.c.l.b16 %v251
        %v332 = vunpack.c.l.b16 %v252
        %v333 = vpack.c.b16 %v302, %v301
        %v334 = vpack.c.b16 %v304, %v303
        %v335 = vpack.c.b16 %v306, %v305
        %v336 = vpack.c.b16 %v308, %v307
        %v337 = vpack.c.b16 %v310, %v309
        %v338 = vpack.c.b16 %v312, %v311
        %v339 = vpack.c.b16 %v314, %v313
        %v340 = vpack.c.b16 %v316, %v315
        %v341 = vpack.c.b16 %v318, %v317
        %v342 = vpack.c.b16 %v320, %v319
        %v343 = vpack.c.b16 %v322, %v321
        %v344 = vpack.c.b16 %v324, %v323
        %v345 = vpack.c.b16 %v326, %v325
        %v346 = vpack.c.b16 %v328, %v327
        %v347 = vpack.c.b16 %v330, %v329
        %v348 = vpack.c.b16 %v332, %v331
        %v381 = vunpack.c.l.b16 %v253
        %v382 = vunpack.c.l.b16 %v254
        %v383 = vunpack.c.l.b16 %v255
        %v384 = vunpack.c.l.b16 %v256
        %v385 = vunpack.c.l.b16 %v257
        %v386 = vunpack.c.l.b16 %v258
        %v387 = vunpack.c.l.b16 %v259
        %v388 = vunpack.c.l.b16 %v260
        %v389 = vunpack.c.l.b16 %v261
        %v390 = vunpack.c.l.b16 %v262
        %v391 = vunpack.c.l.b16 %v263
        %v392 = vunpack.c.l.b16 %v264
        %v393 = vunpack.c.l.b16 %v265
        %v394 = vunpack.c.l.b16 %v266
        %v395 = vunpack.c.l.b16 %v267
        %v396 = vunpack.c.l.b16 %v268
        %v397 = vpack.c.b16 %v382, %v381
        %v398 = vpack.c.b16 %v384, %v383
        %v399 = vpack.c.b16 %v386, %v385
        %v400 = vpack.c.b16 %v388, %v387
        %v401 = vpack.c.b16 %v390, %v389
        %v402 = vpack.c.b16 %v392, %v391
        %v403 = vpack.c.b16 %v394, %v393
        %v404 = vpack.c.b16 %v396, %v395
        %413 = vmatpush.bf16.msra.mxu0 %v404
        %414 = vmatpush.bf16.msra.mxu0 %v403
        %415 = vmatpush.bf16.msra.mxu0 %v402
        %416 = vmatpush.bf16.msra.mxu0 %v401
        %417 = vmatpush.bf16.msra.mxu0 %v400
        %418 = vmatpush.bf16.msra.mxu0 %v399
        %419 = vmatpush.bf16.msra.mxu0 %v398
        %420 = vmatpush.bf16.msra.mxu0 %v397
        %421 = vmatmul.bf16.gmra.mxu0 %v333
        %v422 = vpop.f32.mrf.mxu0
        %v423 = vadd.f32 0.0, %v422
        %v424 = vpop.f32.mrf.mxu0
        %v425 = vadd.f32 0.0, %v424
        %426 = vmatmul.bf16.gmra.mxu0 %v334
        %v427 = vpop.f32.mrf.mxu0
        %v428 = vadd.f32 0.0, %v427
        %v429 = vpop.f32.mrf.mxu0
        %v430 = vadd.f32 0.0, %v429
        %431 = vmatmul.bf16.gmra.mxu0 %v335
        %v432 = vpop.f32.mrf.mxu0
        %v433 = vadd.f32 0.0, %v432
        %v434 = vpop.f32.mrf.mxu0
        %v435 = vadd.f32 0.0, %v434
        %436 = vmatmul.bf16.gmra.mxu0 %v336
        %v437 = vpop.f32.mrf.mxu0
        %v438 = vadd.f32 0.0, %v437
        %v439 = vpop.f32.mrf.mxu0
        %v440 = vadd.f32 0.0, %v439
        %441 = vmatmul.bf16.gmra.mxu0 %v337
        %v442 = vpop.f32.mrf.mxu0
        %v443 = vadd.f32 0.0, %v442
        %v444 = vpop.f32.mrf.mxu0
        %v445 = vadd.f32 0.0, %v444
        %446 = vmatmul.bf16.gmra.mxu0 %v338
        %v447 = vpop.f32.mrf.mxu0
        %v448 = vadd.f32 0.0, %v447
        %v449 = vpop.f32.mrf.mxu0
        %v450 = vadd.f32 0.0, %v449
        %451 = vmatmul.bf16.gmra.mxu0 %v339
        %v452 = vpop.f32.mrf.mxu0
        %v453 = vadd.f32 0.0, %v452
        %v454 = vpop.f32.mrf.mxu0
        %v455 = vadd.f32 0.0, %v454
        %456 = vmatmul.bf16.gmra.mxu0 %v340
        %v457 = vpop.f32.mrf.mxu0
        %v458 = vadd.f32 0.0, %v457
        %v459 = vpop.f32.mrf.mxu0
        %v460 = vadd.f32 0.0, %v459
        %461 = vmatmul.bf16.gmra.mxu0 %v341
        %v462 = vpop.f32.mrf.mxu0
        %v463 = vadd.f32 0.0, %v462
        %v464 = vpop.f32.mrf.mxu0
        %v465 = vadd.f32 0.0, %v464
        %466 = vmatmul.bf16.gmra.mxu0 %v342
        %v467 = vpop.f32.mrf.mxu0
        %v468 = vadd.f32 0.0, %v467
        %v469 = vpop.f32.mrf.mxu0
        %v470 = vadd.f32 0.0, %v469
        %471 = vmatmul.bf16.gmra.mxu0 %v343
        %v472 = vpop.f32.mrf.mxu0
        %v473 = vadd.f32 0.0, %v472
        %v474 = vpop.f32.mrf.mxu0
        %v475 = vadd.f32 0.0, %v474
        %476 = vmatmul.bf16.gmra.mxu0 %v344
        %v477 = vpop.f32.mrf.mxu0
        %v478 = vadd.f32 0.0, %v477
        %v479 = vpop.f32.mrf.mxu0
        %v480 = vadd.f32 0.0, %v479
        %481 = vmatmul.bf16.gmra.mxu0 %v345
        %v482 = vpop.f32.mrf.mxu0
        %v483 = vadd.f32 0.0, %v482
        %v484 = vpop.f32.mrf.mxu0
        %v485 = vadd.f32 0.0, %v484
        %486 = vmatmul.bf16.gmra.mxu0 %v346
        %v487 = vpop.f32.mrf.mxu0
        %v488 = vadd.f32 0.0, %v487
        %v489 = vpop.f32.mrf.mxu0
        %v490 = vadd.f32 0.0, %v489
        %491 = vmatmul.bf16.gmra.mxu0 %v347
        %v492 = vpop.f32.mrf.mxu0
        %v493 = vadd.f32 0.0, %v492
        %v494 = vpop.f32.mrf.mxu0
        %v495 = vadd.f32 0.0, %v494
        %496 = vmatmul.bf16.gmra.mxu0 %v348
        %v497 = vpop.f32.mrf.mxu0
        %v498 = vadd.f32 0.0, %v497
        %v499 = vpop.f32.mrf.mxu0
        %v500 = vadd.f32 0.0, %v499
        %501 = vdwg.mxu0
        %502 = vst [vmem:[%s211] sm:$0xff] %v423
        %503 = vst [vmem:[%s211 + $0x8] sm:$0xff] %v425
        %504 = vst [vmem:[%s211 + $0x10] sm:$0xff] %v428
        %505 = vst [vmem:[%s211 + $0x18] sm:$0xff] %v430
        %506 = vst [vmem:[%s211 + $0x20] sm:$0xff] %v433
        %507 = vst [vmem:[%s211 + $0x28] sm:$0xff] %v435
        %508 = vst [vmem:[%s211 + $0x30] sm:$0xff] %v438
        %509 = vst [vmem:[%s211 + $0x38] sm:$0xff] %v440
        %510 = vst [vmem:[%s211 + $0x40] sm:$0xff] %v443
        %511 = vst [vmem:[%s211 + $0x48] sm:$0xff] %v445
        %512 = vst [vmem:[%s211 + $0x50] sm:$0xff] %v448
        %513 = vst [vmem:[%s211 + $0x58] sm:$0xff] %v450
        %514 = vst [vmem:[%s211 + $0x60] sm:$0xff] %v453
        %515 = vst [vmem:[%s211 + $0x68] sm:$0xff] %v455
        %516 = vst [vmem:[%s211 + $0x70] sm:$0xff] %v458
        %517 = vst [vmem:[%s211 + $0x78] sm:$0xff] %v460
        %518 = vst [vmem:[%s211 + $0x80] sm:$0xff] %v463
        %519 = vst [vmem:[%s211 + $0x88] sm:$0xff] %v465
        %520 = vst [vmem:[%s211 + $0x90] sm:$0xff] %v468
        %521 = vst [vmem:[%s211 + $0x98] sm:$0xff] %v470
        %522 = vst [vmem:[%s211 + $0xa0] sm:$0xff] %v473
        %523 = vst [vmem:[%s211 + $0xa8] sm:$0xff] %v475
        %524 = vst [vmem:[%s211 + $0xb0] sm:$0xff] %v478
        %525 = vst [vmem:[%s211 + $0xb8] sm:$0xff] %v480
        %526 = vst [vmem:[%s211 + $0xc0] sm:$0xff] %v483
        %527 = vst [vmem:[%s211 + $0xc8] sm:$0xff] %v485
        %528 = vst [vmem:[%s211 + $0xd0] sm:$0xff] %v488
        %529 = vst [vmem:[%s211 + $0xd8] sm:$0xff] %v490
        %530 = vst [vmem:[%s211 + $0xe0] sm:$0xff] %v493
        %531 = vst [vmem:[%s211 + $0xe8] sm:$0xff] %v495
        %532 = vst [vmem:[%s211 + $0xf0] sm:$0xff] %v498
        %533 = vst [vmem:[%s211 + $0xf8] sm:$0xff] %v500
        %v534 = vadd.f32 %v423, %v425
        %v535 = vadd.f32 %v534, %v428
        %v536 = vadd.f32 %v535, %v430
        %v537 = vadd.f32 %v536, %v433
        %v538 = vadd.f32 %v537, %v435
        %v539 = vadd.f32 %v538, %v438
        %v540 = vadd.f32 %v539, %v440
        %v541 = vadd.f32 %v540, %v443
        %v542 = vadd.f32 %v541, %v445
        %v543 = vadd.f32 %v542, %v448
        %v544 = vadd.f32 %v543, %v450
        %v545 = vadd.f32 %v544, %v453
        %v546 = vadd.f32 %v545, %v455
        %v547 = vadd.f32 %v546, %v458
        %v548 = vadd.f32 %v547, %v460
        %v549 = vadd.f32 %v548, %v463
        %v550 = vadd.f32 %v549, %v465
        %v551 = vadd.f32 %v550, %v468
        %v552 = vadd.f32 %v551, %v470
        %v553 = vadd.f32 %v552, %v473
        %v554 = vadd.f32 %v553, %v475
        %v555 = vadd.f32 %v554, %v478
        %v556 = vadd.f32 %v555, %v480
        %v557 = vadd.f32 %v556, %v483
        %v558 = vadd.f32 %v557, %v485
        %v559 = vadd.f32 %v558, %v488
        %v560 = vadd.f32 %v559, %v490
        %v561 = vadd.f32 %v560, %v493
        %v562 = vadd.f32 %v561, %v495
        %v563 = vadd.f32 %v562, %v498
        %v564 = vadd.f32 %v563, %v500
        %v565 = vrot.slane %v564, 4
        %v566 = vadd.f32 %v564, %v565
        %v567 = vrot.slane %v566, 2
        %v568 = vadd.f32 %v566, %v567
        %v569 = vrot.slane %v568, 1
        %v570 = vadd.f32 %v568, %v569
        %571 = vst [vmem:[%s218] sm:$0x1] %v570
        %v572 = vmul.f32 %v423, %v423
        %v573 = vmul.f32 %v425, %v425
        %v574 = vmul.f32 %v428, %v428
        %v575 = vmul.f32 %v430, %v430
        %v576 = vmul.f32 %v433, %v433
        %v577 = vmul.f32 %v435, %v435
        %v578 = vmul.f32 %v438, %v438
        %v579 = vmul.f32 %v440, %v440
        %v580 = vmul.f32 %v443, %v443
        %v581 = vmul.f32 %v445, %v445
        %v582 = vmul.f32 %v448, %v448
        %v583 = vmul.f32 %v450, %v450
        %v584 = vmul.f32 %v453, %v453
        %v585 = vmul.f32 %v455, %v455
        %v586 = vmul.f32 %v458, %v458
        %v587 = vmul.f32 %v460, %v460
        %v588 = vmul.f32 %v463, %v463
        %v589 = vmul.f32 %v465, %v465
        %v590 = vmul.f32 %v468, %v468
        %v591 = vmul.f32 %v470, %v470
        %v592 = vmul.f32 %v473, %v473
        %v593 = vmul.f32 %v475, %v475
        %v594 = vmul.f32 %v478, %v478
        %v595 = vmul.f32 %v480, %v480
        %v596 = vmul.f32 %v483, %v483
        %v597 = vmul.f32 %v485, %v485
        %v598 = vmul.f32 %v488, %v488
        %v599 = vmul.f32 %v490, %v490
        %v600 = vmul.f32 %v493, %v493
        %v601 = vmul.f32 %v495, %v495
        %v602 = vmul.f32 %v498, %v498
        %v603 = vmul.f32 %v500, %v500
        %v604 = vadd.f32 %v572, %v573
        %v605 = vadd.f32 %v604, %v574
        %v606 = vadd.f32 %v605, %v575
        %v607 = vadd.f32 %v606, %v576
        %v608 = vadd.f32 %v607, %v577
        %v609 = vadd.f32 %v608, %v578
        %v610 = vadd.f32 %v609, %v579
        %v611 = vadd.f32 %v610, %v580
        %v612 = vadd.f32 %v611, %v581
        %v613 = vadd.f32 %v612, %v582
        %v614 = vadd.f32 %v613, %v583
        %v615 = vadd.f32 %v614, %v584
        %v616 = vadd.f32 %v615, %v585
        %v617 = vadd.f32 %v616, %v586
        %v618 = vadd.f32 %v617, %v587
        %v619 = vadd.f32 %v618, %v588
        %v620 = vadd.f32 %v619, %v589
        %v621 = vadd.f32 %v620, %v590
        %v622 = vadd.f32 %v621, %v591
        %v623 = vadd.f32 %v622, %v592
        %v624 = vadd.f32 %v623, %v593
        %v625 = vadd.f32 %v624, %v594
        %v626 = vadd.f32 %v625, %v595
        %v627 = vadd.f32 %v626, %v596
        %v628 = vadd.f32 %v627, %v597
        %v629 = vadd.f32 %v628, %v598
        %v630 = vadd.f32 %v629, %v599
        %v631 = vadd.f32 %v630, %v600
        %v632 = vadd.f32 %v631, %v601
        %v633 = vadd.f32 %v632, %v602
        %v634 = vadd.f32 %v633, %v603
        %v635 = vrot.slane %v634, 4
        %v636 = vadd.f32 %v634, %v635
        %v637 = vrot.slane %v636, 2
        %v638 = vadd.f32 %v636, %v637
        %v639 = vrot.slane %v638, 1
        %v640 = vadd.f32 %v638, %v639
        %641 = vst [vmem:[%s218 + $0x1] sm:$0x1] %v640
        %s642 = sand.u32 %s80, 1
        %s643 = scalar_lea.sflag [#allocation4], %s642
        %s644 = sand.u32 %s80, 1
        %s645 = smul.addr %s644, 256
        %s646 = scalar_lea.vmem [#allocation7], %s645
        %s647 = sand.u32 %s106, 1
        %s648 = scalar_lea.sflag [#allocation9], %s647
        %s649 = sand.u32 %s106, 1
        %s650 = smul.addr %s649, 2
        %s651 = scalar_lea.vmem [#allocation8], %s650
        // Predicated region
        $region37: #{tpu_custom_call.1} parent=27 // pred_check
          %p652 = pneg %p90
        $region38: #{tpu_custom_call.1} parent=27 // pred_check_branch
          %654 = sbr.rel (%p652) target = $region40
        $region39: #{tpu_custom_call.1} parent=27 // pred_region
          %s655 = smul.u32 32, %s25
          %657 = vsyncadd %s643, 0
          %s658 = smul.addr %s655, 8
          %s659 = scalar_lea.hbm %s2, %s658
          %s660 = sshll.u32 %s646, 4
          %s661 = int_to_ptr.vmem [resolvable:$true] %s660
          %s662 = sshll.u32 %s659, 4
          %s663 = int_to_ptr.hbm [resolvable:$true] %s662
          %668 = dma.vmem_to_hbm [thread:$0]  %s661, 4096, %s663, %s643, 128, 128, 8
        $region40: #{tpu_custom_call.1} parent=27 // pred_fallthru
          _
        // Predicated region
        $region41: #{tpu_custom_call.1} parent=27 // pred_check
          %p669 = pneg %p116
        $region42: #{tpu_custom_call.1} parent=27 // pred_check_branch
          %671 = sbr.rel (%p669) target = $region44
        $region43: #{tpu_custom_call.1} parent=27 // pred_region
          %673 = vsyncadd %s648, 0
          %s674 = smul.addr %s25, 2
          %s675 = scalar_lea.hbm %s3, %s674
          %s677 = sshll.u32 %s651, 4
          %s678 = int_to_ptr.vmem [resolvable:$true] %s677
          %s679 = sshll.u32 %s675, 4
          %s680 = int_to_ptr.hbm [resolvable:$true] %s679
          %682 = dma.vmem_to_hbm [thread:$0]  %s678, 32, %s680, %s648
        $region44: #{tpu_custom_call.1} parent=27 // pred_fallthru
          _
      $region28: #{tpu_custom_call.1} parent=5 // pred_fallthru
        _
      %p683 = scmp.le.s32.totalorder 2, %s20
      // Predicated region
      $region45: #{tpu_custom_call.1} parent=5 // pred_check
        %p684 = pneg %p683
      $region46: #{tpu_custom_call.1} parent=5 // pred_check_branch
        %686 = sbr.rel (%p684) target = $region48
      $region47: #{tpu_custom_call.1} parent=5 // pred_region
        %s687 = ssub.s32 %s20, 2
        // Predicated region
        $region49: #{tpu_custom_call.1} parent=47 // pred_check
          %p688 = pneg %p96
        $region50: #{tpu_custom_call.1} parent=47 // pred_check_branch
          %690 = sbr.rel (%p688) target = $region52
        $region51: #{tpu_custom_call.1} parent=47 // pred_region
          %s691 = sand.u32 %s81, 1
          %s692 = scalar_lea.sflag [#allocation4], %s691
          %s693 = sand.u32 %s81, 1
          %s694 = smul.addr %s693, 256
          %s695 = scalar_lea.vmem [#allocation7], %s694
          %697 = dma.done %s692, 4096
        $region52: #{tpu_custom_call.1} parent=47 // pred_fallthru
          _
        // Predicated region
        $region53: #{tpu_custom_call.1} parent=47 // pred_check
          %p698 = pneg %p122
        $region54: #{tpu_custom_call.1} parent=47 // pred_check_branch
          %700 = sbr.rel (%p698) target = $region56
        $region55: #{tpu_custom_call.1} parent=47 // pred_region
          %s701 = sand.u32 %s107, 1
          %s702 = scalar_lea.sflag [#allocation9], %s701
          %s703 = sand.u32 %s107, 1
          %s704 = smul.addr %s703, 2
          %s705 = scalar_lea.vmem [#allocation8], %s704
          %707 = dma.done %s702, 32
        $region56: #{tpu_custom_call.1} parent=47 // pred_fallthru
          _
      $region48: #{tpu_custom_call.1} parent=5 // pred_fallthru
        _
    $region6: #{tpu_custom_call.1} parent=1 // loop_footer
      %s24 = sadd.s32 1, %s20
    $region7: #{tpu_custom_call.1} parent=1 // loop_footer_branch
      %19 = sbr.rel target = $region3
    $region8: #{tpu_custom_call.1} parent=1 // loop_exit
      _
    %708 = vsyncpa [#allocation3], 1
    %s709 = scalar_lea.sflag [#allocation3], 1
    %710 = vsyncpa %s709, 1
    %711 = vsyncpa [#allocation6], 1
    %712 = vsyncpa [#allocation4], 1
    %s713 = scalar_lea.sflag [#allocation4], 1
    %714 = vsyncpa %s713, 1
    %715 = vsyncpa [#allocation9], 1
    %s716 = scalar_lea.sflag [#allocation9], 1
    %717 = vsyncpa %s716, 1

</llo_original>
